<compile_context>
chip_gen: v5e
topology: v5e:2x2
jax: 0.10.0
libtpu: 0.0.40
codegen_flags: <defaults>
</compile_context>

<pallas_src>
import functools

import jax
import jax.numpy as jnp
import numpy as np
from jax import lax
from jax.experimental import pallas as pl
from jax.experimental.pallas import tpu as pltpu


# ----------------------------- main fused kernel -----------------------------

def dablock_kernel(x_ref, w1t_ref, w2t_ref, o_ref, *, hw_real):
    """x_ref/o_ref: (bn, C, D, HWp); w1t_ref: (D, Dr); w2t_ref: (Dr, D)."""
    bn, C, D, HWp = x_ref.shape
    unroll = C <= 8
    neg = jnp.finfo(jnp.float32).min

    if HWp != hw_real:
        # Padded lanes must not win the max; they contribute 0 to the sum.
        lane = lax.broadcasted_iota(jnp.int32, (1, 1, HWp), 2)

        def mask_for_max(v):
            return jnp.where(lane < hw_real, v, neg)
    else:
        def mask_for_max(v):
            return v

    # Phase 1: fused max+sum pooling -- single streamed pass over x (per C).
    x0 = x_ref[:, 0, :, :]                                    # (bn, D, HWp)

    def reduce_body(c, carry):
        run_m, run_s = carry
        xc = x_ref[:, c, :, :]
        return jnp.maximum(run_m, mask_for_max(xc)), run_s + xc

    run_m, run_s = lax.fori_loop(1, C, reduce_body,
                                 (mask_for_max(x0), x0), unroll=unroll)

    max_p = jnp.max(run_m, axis=-1)                           # (bn, D)
    avg_p = jnp.sum(run_s, axis=-1) * (1.0 / float(C * hw_real))

    # Phase 2: shared MLP on both pooled vectors (one pair of small matmuls).
    pools = jnp.concatenate([max_p, avg_p], axis=0)           # (2*bn, D)
    h = jnp.maximum(
        jnp.dot(pools, w1t_ref[...], preferred_element_type=jnp.float32), 0.0)
    y = jnp.dot(h, w2t_ref[...], preferred_element_type=jnp.float32)
    att = jax.nn.sigmoid(y[:bn] + y[bn:])                     # (bn, D)
    scale3 = (1.0 + att)[:, :, None]                          # (bn, D, 1)

    # Phase 3: out = x * (1 + att), streamed per C slice.
    def apply_body(c, carry):
        o_ref[:, c, :, :] = (x_ref[:, c, :, :] * scale3).astype(o_ref.dtype)
        return carry

    lax.fori_loop(0, C, apply_body, 0, unroll=unroll)


# --------------------------- fallback (two-pass) kernels ----------------------

def _reduce_att_kernel(x_ref, w1t_ref, w2t_ref, att_ref, m_sc, s_sc, *,
                       hw_real, c_real):
    """Fallback pass 1: pool over (C, H*W) chunk-by-chunk, then MLP + sigmoid."""
    c = pl.program_id(1)
    neg = jnp.finfo(jnp.float32).min

    x = x_ref[...]                                            # (1, Cc, D, HWp)
    HWp = x.shape[-1]
    if HWp != hw_real:
        lane = lax.broadcasted_iota(jnp.int32, x.shape, 3)
        x_for_max = jnp.where(lane < hw_real, x, neg)
    else:
        x_for_max = x

    part_max = jnp.max(x_for_max, axis=(1, 3))                # (1, D)
    part_sum = jnp.sum(x, axis=(1, 3))                        # (1, D)

    @pl.when(c == 0)
    def _():
        m_sc[...] = jnp.full_like(m_sc, neg)
        s_sc[...] = jnp.zeros_like(s_sc)

    m_sc[...] = jnp.maximum(m_sc[...], part_max)
    s_sc[...] = s_sc[...] + part_sum

    @pl.when(c == pl.num_programs(1) - 1)
    def _():
        inv = 1.0 / float(c_real * hw_real)
        pools = jnp.concatenate([m_sc[...], s_sc[...] * inv], axis=0)    # (2, D)
        h = jnp.maximum(
            jnp.dot(pools, w1t_ref[...], preferred_element_type=jnp.float32),
            0.0)
        y = jnp.dot(h, w2t_ref[...], preferred_element_type=jnp.float32)
        att = jax.nn.sigmoid(y[0:1, :] + y[1:2, :])                       # (1, D)
        att_ref[...] = att.reshape(att_ref.shape).astype(att_ref.dtype)


def _apply_kernel(att_ref, x_ref, o_ref):
    """Fallback pass 2: out = x * (1 + att), att broadcast over (C, H*W)."""
    scale = 1.0 + att_ref[...][:, :, :, None]                 # (1, 1, D, 1)
    o_ref[...] = (x_ref[...] * scale).astype(o_ref.dtype)


# ----------------------------------- helpers ---------------------------------

def _round_up(x, m):
    return (x + m - 1) // m * m


def _vmem_capacity_bytes():
    try:
        cap = getattr(pltpu.get_tpu_info(), "vmem_capacity_bytes", None)
        if cap:
            return int(cap)
    except Exception:
        pass
    return 64 << 20                      # conservative (v7x per-TensorCore)


def _pick_bn(n, slab_bytes, max_block_bytes, target_block_bytes=2 << 20,
             target_steps=8):
    """Pick batch-per-step: prefer pipeline depth (>=target_steps), even step
    counts (v7x megacore), then a block size near ~2 MiB. None -> fallback."""
    divisors = [d for d in range(1, n + 1) if n % d == 0]
    fitting = [d for d in divisors if d * slab_bytes <= max_block_bytes]
    if not fitting:
        return None

    def score(d):
        steps = n // d
        block = d * slab_bytes
        return (min(steps, target_steps),          # pipeline depth first
                1 if steps % 2 == 0 else 0,        # even -> both v7x cores busy
                -abs(block - target_block_bytes))  # then ~2 MiB blocks

    return max(fitting, key=score)


def _pick_cc(C, per_c_bytes, max_block_bytes, target_block_bytes=2 << 20):
    divisors = [d for d in range(1, C + 1) if C % d == 0]
    fitting = [d for d in divisors if d * per_c_bytes <= max_block_bytes]
    if not fitting:
        # TODO(synk): also tile the H*W axis when a single (D, H*W) slice
        # exceeds the VMEM block budget.
        return 1
    return max(fitting, key=lambda d: -abs(d * per_c_bytes - target_block_bytes))


# ----------------------------------- wrappers ---------------------------------

def _dablock_fallback(xr, w1t, w2t, *, hw_real, cap, block_budget):
    """Two-pass, C-chunked path for slabs too large for the single-pass kernel."""
    N, C, D, HWp = xr.shape
    itemsize = xr.dtype.itemsize
    per_c = D * HWp * itemsize
    Cc = _pick_cc(C, per_c, min(block_budget, 4 << 20))
    Ck = C // Cc
    block = Cc * per_c
    wbytes = (w1t.size + w2t.size) * itemsize
    vmem_limit = int(min(max(4 * block + 2 * wbytes + (2 << 20), 16 << 20),
                         3 * cap // 4))

    att = pl.pallas_call(
        functools.partial(_reduce_att_kernel, hw_real=hw_real, c_real=C),
        out_shape=jax.ShapeDtypeStruct((N, 1, D), jnp.float32),
        grid_spec=pltpu.PrefetchScalarGridSpec(
            num_scalar_prefetch=0,
            grid=(N, Ck),
            in_specs=[
                pl.BlockSpec((1, Cc, D, HWp), lambda n, c: (n, c, 0, 0)),
                pl.BlockSpec(w1t.shape, lambda n, c: (0, 0)),
                pl.BlockSpec(w2t.shape, lambda n, c: (0, 0)),
            ],
            out_specs=pl.BlockSpec((1, 1, D), lambda n, c: (n, 0, 0)),
            scratch_shapes=[pltpu.VMEM((1, D), jnp.float32),
                            pltpu.VMEM((1, D), jnp.float32)],
        ),
        compiler_params=pltpu.CompilerParams(
            dimension_semantics=("parallel", "arbitrary"),
            vmem_limit_bytes=vmem_limit),
    )(xr, w1t, w2t)

    out = pl.pallas_call(
        _apply_kernel,
        out_shape=jax.ShapeDtypeStruct((N, C, D, HWp), xr.dtype),
        grid_spec=pltpu.PrefetchScalarGridSpec(
            num_scalar_prefetch=0,
            grid=(N, Ck),
            in_specs=[
                pl.BlockSpec((1, 1, D), lambda n, c: (n, 0, 0)),
                pl.BlockSpec((1, Cc, D, HWp), lambda n, c: (n, c, 0, 0)),
            ],
            out_specs=pl.BlockSpec((1, Cc, D, HWp), lambda n, c: (n, c, 0, 0)),
        ),
        compiler_params=pltpu.CompilerParams(
            dimension_semantics=("parallel", "parallel"),
            vmem_limit_bytes=vmem_limit),
    )(att, xr)
    return out


def dablock_pallas(x, w1, w2, *, slab_budget_bytes=None):
    """x: (N, C, D, H, W) float32, w1: (D//r, D), w2: (D, D//r)."""
    N, C, D, H, W = x.shape
    HW = H * W
    HWp = _round_up(HW, 128)                 # lane-dense last dim -> unmasked vst
    itemsize = x.dtype.itemsize

    # Free trailing-dim merge (keeps NCDHW order); pad H*W to 128 lanes if needed.
    xr = x.reshape(N, C, D, HW)
    if HWp != HW:
        xr = jnp.pad(xr, ((0, 0), (0, 0), (0, 0), (0, HWp - HW)))

    # Pre-transpose 1x1x1 conv weights so in-kernel dots need no transpose.
    w1t = jnp.transpose(w1)                  # (D, Dr)
    w2t = jnp.transpose(w2)                  # (Dr, D)
    wbytes = (w1t.size + w2t.size) * itemsize

    cap = _vmem_capacity_bytes()             # generation-aware VMEM budgeting
    slab = C * D * HWp * itemsize            # one batch element in VMEM
    budget = slab_budget_bytes if slab_budget_bytes is not None else cap // 8
    bn = _pick_bn(N, slab, budget)

    if bn is None:
        out = _dablock_fallback(xr, w1t, w2t, hw_real=HW, cap=cap,
                                block_budget=budget)
    else:
        block = bn * slab
        run_bytes = 2 * bn * D * HWp * itemsize     # fused running max/sum temps
        vmem_limit = int(min(max(4 * block + run_bytes + 2 * wbytes + (2 << 20),
                                 16 << 20),
                             3 * cap // 4))
        Dr = w1.shape[0]
        cost = pl.CostEstimate(
            flops=int(4 * xr.size + 8 * N * D * Dr),
            transcendentals=int(N * D),
            bytes_accessed=int(2 * xr.size * itemsize + 2 * wbytes))

        out = pl.pallas_call(
            functools.partial(dablock_kernel, hw_real=HW),
            out_shape=jax.ShapeDtypeStruct((N, C, D, HWp), x.dtype),
            grid_spec=pltpu.PrefetchScalarGridSpec(
                num_scalar_prefetch=0,
                grid=(N // bn,),
                in_specs=[
                    pl.BlockSpec((bn, C, D, HWp), lambda n: (n, 0, 0, 0)),
                    pl.BlockSpec(w1t.shape, lambda n: (0, 0)),
                    pl.BlockSpec(w2t.shape, lambda n: (0, 0)),
                ],
                out_specs=pl.BlockSpec((bn, C, D, HWp), lambda n: (n, 0, 0, 0)),
            ),
            compiler_params=pltpu.CompilerParams(
                dimension_semantics=("parallel",),
                vmem_limit_bytes=vmem_limit),
            cost_estimate=cost,
        )(xr, w1t, w2t)

    if HWp != HW:
        out = out[..., :HW]
    return out.reshape(N, C, D, H, W)


def dablock_ref(x, w1, w2):
    """Pure-JAX reference of the PyTorch forward."""
    xp = jnp.transpose(x, (0, 2, 1, 3, 4))           # (N, D, C, H, W)
    max_p = jnp.max(xp, axis=(2, 3, 4))              # (N, D)
    avg_p = jnp.mean(xp, axis=(2, 3, 4))             # (N, D)

    def mlp(v):                                      # (N, D)
        h = jnp.maximum(v @ w1.T, 0.0)               # (N, Dr)
        return h @ w2.T                              # (N, D)

    att = jax.nn.sigmoid(mlp(max_p) + mlp(avg_p))    # (N, D)
    att = att[:, None, :, None, None]                # (N,1,D,1,1)
    return x * att + x


if __name__ == "__main__":
    key = jax.random.PRNGKey(0)
    kx, k1, k2, kx2 = jax.random.split(key, 4)

    # Small shapes consistent with the module: disparity D=32, reduction=8.
    N, C, D, H, W = 2, 4, 32, 16, 16
    reduction = 8
    Dr = D // reduction

    x = jax.random.normal(kx, (N, C, D, H, W), dtype=jnp.float32)
    w1 = jax.random.normal(k1, (Dr, D), dtype=jnp.float32) * (2.0 / D) ** 0.5
    w2 = jax.random.normal(k2, (D, Dr), dtype=jnp.float32) * (2.0 / Dr) ** 0.5

    # 1) Main fused single-pass path (H*W multiple of 128).
    out = jax.block_until_ready(dablock_pallas(x, w1, w2))
    ref = jax.block_until_ready(dablock_ref(x, w1, w2))
    np.testing.assert_allclose(np.asarray(out), np.asarray(ref),
                               rtol=1e-5, atol=1e-5)

    # 2) Non-128-multiple H*W -> exercises lane padding + in-kernel max mask.
    x_odd = jax.random.normal(kx2, (N, C, D, 10, 10), dtype=jnp.float32)
    out_odd = jax.block_until_ready(dablock_pallas(x_odd, w1, w2))
    ref_odd = jax.block_until_ready(dablock_ref(x_odd, w1, w2))
    np.testing.assert_allclose(np.asarray(out_odd), np.asarray(ref_odd),
                               rtol=1e-5, atol=1e-5)

    # 3) Force the out-of-VMEM fallback (two-pass, C-chunked) on the same data.
    out_fb = jax.block_until_ready(
        dablock_pallas(x, w1, w2, slab_budget_bytes=64 << 10))
    np.testing.assert_allclose(np.asarray(out_fb), np.asarray(ref),
                               rtol=1e-5, atol=1e-5)

    print("KERNEL_OK")
</pallas_src>

<mosaic_0001>
module attributes {stable_mosaic.version = 11 : i64} {
  func.func @dablock_kernel(%arg0: i32, %arg1: memref<1x4x32x256xf32, #tpu.memory_space<vmem>>, %arg2: memref<32x4xf32, #tpu.memory_space<vmem>>, %arg3: memref<4x32xf32, #tpu.memory_space<vmem>>, %arg4: memref<1x4x32x256xf32, #tpu.memory_space<vmem>>) attributes {dimension_semantics = [#tpu.dimension_semantics<parallel>], iteration_bounds = array<i64: 2>, scalar_prefetch = 0 : i64, scratch_operands = 0 : i64, tpu.core_type = #tpu.core_type<tc>, window_params = [{transform_indices = @transform_0, window_bounds = array<i64: 1, 4, 32, 256>}, {pipeline_mode = #tpu.pipeline_mode<synchronous>, transform_indices = @transform_1, window_bounds = array<i64: 32, 4>}, {pipeline_mode = #tpu.pipeline_mode<synchronous>, transform_indices = @transform_2, window_bounds = array<i64: 4, 32>}, {transform_indices = @transform_3, window_bounds = array<i64: 1, 4, 32, 256>}]} {
    %c0 = arith.constant 0 : index
    %c0_0 = arith.constant 0 : index
    %c0_1 = arith.constant 0 : index
    %c0_2 = arith.constant 0 : index
    %0 = vector.load %arg1[%c0, %c0_0, %c0_1, %c0_2] : memref<1x4x32x256xf32, #tpu.memory_space<vmem>>, vector<1x1x32x256xf32>
    %1 = vector.shape_cast %0 : vector<1x1x32x256xf32> to vector<1x32x256xf32>
    %c1_i32 = arith.constant 1 : i32
    %c0_3 = arith.constant 0 : index
    %2 = arith.index_cast %c1_i32 : i32 to index
    %c0_4 = arith.constant 0 : index
    %c0_5 = arith.constant 0 : index
    %3 = vector.load %arg1[%c0_3, %2, %c0_4, %c0_5] : memref<1x4x32x256xf32, #tpu.memory_space<vmem>>, vector<1x1x32x256xf32>
    %4 = vector.shape_cast %3 : vector<1x1x32x256xf32> to vector<1x32x256xf32>
    %5 = arith.maximumf %1, %4 : vector<1x32x256xf32>
    %6 = arith.addf %1, %4 : vector<1x32x256xf32>
    %c2_i32 = arith.constant 2 : i32
    %c0_6 = arith.constant 0 : index
    %7 = arith.index_cast %c2_i32 : i32 to index
    %c0_7 = arith.constant 0 : index
    %c0_8 = arith.constant 0 : index
    %8 = vector.load %arg1[%c0_6, %7, %c0_7, %c0_8] : memref<1x4x32x256xf32, #tpu.memory_space<vmem>>, vector<1x1x32x256xf32>
    %9 = vector.shape_cast %8 : vector<1x1x32x256xf32> to vector<1x32x256xf32>
    %10 = arith.maximumf %5, %9 : vector<1x32x256xf32>
    %11 = arith.addf %6, %9 : vector<1x32x256xf32>
    %c3_i32 = arith.constant 3 : i32
    %c0_9 = arith.constant 0 : index
    %12 = arith.index_cast %c3_i32 : i32 to index
    %c0_10 = arith.constant 0 : index
    %c0_11 = arith.constant 0 : index
    %13 = vector.load %arg1[%c0_9, %12, %c0_10, %c0_11] : memref<1x4x32x256xf32, #tpu.memory_space<vmem>>, vector<1x1x32x256xf32>
    %14 = vector.shape_cast %13 : vector<1x1x32x256xf32> to vector<1x32x256xf32>
    %15 = arith.maximumf %10, %14 : vector<1x32x256xf32>
    %16 = arith.addf %11, %14 : vector<1x32x256xf32>
    %c3_i32_12 = arith.constant 3 : i32
    %cst = arith.constant dense<0xFF800000> : vector<1x32xf32>
    %17 = vector.multi_reduction <maximumf>, %15, %cst [2] : vector<1x32x256xf32> to vector<1x32xf32>
    %cst_13 = arith.constant dense<0.000000e+00> : vector<1x32xf32>
    %18 = vector.multi_reduction <add>, %16, %cst_13 [2] : vector<1x32x256xf32> to vector<1x32xf32>
    %cst_14 = arith.constant 9.765625E-4 : f32
    %19 = vector.broadcast %cst_14 : f32 to vector<1x32xf32>
    %20 = arith.mulf %18, %19 : vector<1x32xf32>
    %21 = tpu.concatenate %17, %20 in 0 : vector<1x32xf32>, vector<1x32xf32> -> vector<2x32xf32>
    %c0_15 = arith.constant 0 : index
    %c0_16 = arith.constant 0 : index
    %22 = vector.load %arg2[%c0_15, %c0_16] : memref<32x4xf32, #tpu.memory_space<vmem>>, vector<32x4xf32>
    %cst_17 = arith.constant dense<0.000000e+00> : vector<2x4xf32>
    %23 = tpu.matmul %21, %22, %cst_17 {dimension_numbers = #tpu.dot_dimension_numbers<[1], [0], [0], [1], [0, 0, 1, 1], [], []>} : vector<2x32xf32>, vector<32x4xf32>, vector<2x4xf32> -> vector<2x4xf32>
    %cst_18 = arith.constant 0.000000e+00 : f32
    %24 = vector.broadcast %cst_18 : f32 to vector<2x4xf32>
    %25 = arith.maximumf %23, %24 : vector<2x4xf32>
    %c0_19 = arith.constant 0 : index
    %c0_20 = arith.constant 0 : index
    %26 = vector.load %arg3[%c0_19, %c0_20] : memref<4x32xf32, #tpu.memory_space<vmem>>, vector<4x32xf32>
    %cst_21 = arith.constant dense<0.000000e+00> : vector<2x32xf32>
    %27 = tpu.matmul %25, %26, %cst_21 {dimension_numbers = #tpu.dot_dimension_numbers<[1], [0], [0], [1], [0, 0, 1, 1], [], []>} : vector<2x4xf32>, vector<4x32xf32>, vector<2x32xf32> -> vector<2x32xf32>
    %28 = vector.extract_strided_slice %27 {offsets = [0, 0], sizes = [1, 32], strides = [1, 1]} : vector<2x32xf32> to vector<1x32xf32>
    %29 = vector.extract_strided_slice %27 {offsets = [1, 0], sizes = [1, 32], strides = [1, 1]} : vector<2x32xf32> to vector<1x32xf32>
    %30 = arith.addf %28, %29 : vector<1x32xf32>
    %31 = arith.negf %30 : vector<1x32xf32>
    %32 = math.exp %31 : vector<1x32xf32>
    %cst_22 = arith.constant 1.000000e+00 : f32
    %33 = vector.broadcast %cst_22 : f32 to vector<1x32xf32>
    %34 = arith.addf %33, %32 : vector<1x32xf32>
    %35 = arith.divf %33, %34 : vector<1x32xf32>
    %cst_23 = arith.constant 1.000000e+00 : f32
    %36 = vector.broadcast %cst_23 : f32 to vector<1x32xf32>
    %37 = arith.addf %36, %35 : vector<1x32xf32>
    %38 = vector.shape_cast %37 : vector<1x32xf32> to vector<1x32x1xf32>
    %c0_i32 = arith.constant 0 : i32
    %c0_24 = arith.constant 0 : index
    %39 = arith.index_cast %c0_i32 : i32 to index
    %c0_25 = arith.constant 0 : index
    %c0_26 = arith.constant 0 : index
    %40 = vector.load %arg1[%c0_24, %39, %c0_25, %c0_26] : memref<1x4x32x256xf32, #tpu.memory_space<vmem>>, vector<1x1x32x256xf32>
    %41 = vector.shape_cast %40 : vector<1x1x32x256xf32> to vector<1x32x256xf32>
    %42 = vector.broadcast %38 : vector<1x32x1xf32> to vector<1x32x256xf32>
    %43 = arith.mulf %41, %42 : vector<1x32x256xf32>
    %c0_27 = arith.constant 0 : index
    %44 = arith.index_cast %c0_i32 : i32 to index
    %c0_28 = arith.constant 0 : index
    %c0_29 = arith.constant 0 : index
    %45 = vector.load %arg4[%c0_27, %44, %c0_28, %c0_29] : memref<1x4x32x256xf32, #tpu.memory_space<vmem>>, vector<1x1x32x256xf32>
    %46 = vector.shape_cast %45 : vector<1x1x32x256xf32> to vector<1x32x256xf32>
    %47 = vector.shape_cast %43 : vector<1x32x256xf32> to vector<1x1x32x256xf32>
    tpu.vector_store %arg4[%c0_27, %44, %c0_28, %c0_29], %47 {strides = array<i32>} : memref<1x4x32x256xf32, #tpu.memory_space<vmem>>, vector<1x1x32x256xf32>,
    %c1_i32_30 = arith.constant 1 : i32
    %c0_31 = arith.constant 0 : index
    %48 = arith.index_cast %c1_i32_30 : i32 to index
    %c0_32 = arith.constant 0 : index
    %c0_33 = arith.constant 0 : index
    %49 = vector.load %arg1[%c0_31, %48, %c0_32, %c0_33] : memref<1x4x32x256xf32, #tpu.memory_space<vmem>>, vector<1x1x32x256xf32>
    %50 = vector.shape_cast %49 : vector<1x1x32x256xf32> to vector<1x32x256xf32>
    %51 = vector.broadcast %38 : vector<1x32x1xf32> to vector<1x32x256xf32>
    %52 = arith.mulf %50, %51 : vector<1x32x256xf32>
    %c0_34 = arith.constant 0 : index
    %53 = arith.index_cast %c1_i32_30 : i32 to index
    %c0_35 = arith.constant 0 : index
    %c0_36 = arith.constant 0 : index
    %54 = vector.load %arg4[%c0_34, %53, %c0_35, %c0_36] : memref<1x4x32x256xf32, #tpu.memory_space<vmem>>, vector<1x1x32x256xf32>
    %55 = vector.shape_cast %54 : vector<1x1x32x256xf32> to vector<1x32x256xf32>
    %56 = vector.shape_cast %52 : vector<1x32x256xf32> to vector<1x1x32x256xf32>
    tpu.vector_store %arg4[%c0_34, %53, %c0_35, %c0_36], %56 {strides = array<i32>} : memref<1x4x32x256xf32, #tpu.memory_space<vmem>>, vector<1x1x32x256xf32>,
    %c2_i32_37 = arith.constant 2 : i32
    %c0_38 = arith.constant 0 : index
    %57 = arith.index_cast %c2_i32_37 : i32 to index
    %c0_39 = arith.constant 0 : index
    %c0_40 = arith.constant 0 : index
    %58 = vector.load %arg1[%c0_38, %57, %c0_39, %c0_40] : memref<1x4x32x256xf32, #tpu.memory_space<vmem>>, vector<1x1x32x256xf32>
    %59 = vector.shape_cast %58 : vector<1x1x32x256xf32> to vector<1x32x256xf32>
    %60 = vector.broadcast %38 : vector<1x32x1xf32> to vector<1x32x256xf32>
    %61 = arith.mulf %59, %60 : vector<1x32x256xf32>
    %c0_41 = arith.constant 0 : index
    %62 = arith.index_cast %c2_i32_37 : i32 to index
    %c0_42 = arith.constant 0 : index
    %c0_43 = arith.constant 0 : index
    %63 = vector.load %arg4[%c0_41, %62, %c0_42, %c0_43] : memref<1x4x32x256xf32, #tpu.memory_space<vmem>>, vector<1x1x32x256xf32>
    %64 = vector.shape_cast %63 : vector<1x1x32x256xf32> to vector<1x32x256xf32>
    %65 = vector.shape_cast %61 : vector<1x32x256xf32> to vector<1x1x32x256xf32>
    tpu.vector_store %arg4[%c0_41, %62, %c0_42, %c0_43], %65 {strides = array<i32>} : memref<1x4x32x256xf32, #tpu.memory_space<vmem>>, vector<1x1x32x256xf32>,
    %c3_i32_44 = arith.constant 3 : i32
    %c0_45 = arith.constant 0 : index
    %66 = arith.index_cast %c3_i32_44 : i32 to index
    %c0_46 = arith.constant 0 : index
    %c0_47 = arith.constant 0 : index
    %67 = vector.load %arg1[%c0_45, %66, %c0_46, %c0_47] : memref<1x4x32x256xf32, #tpu.memory_space<vmem>>, vector<1x1x32x256xf32>
    %68 = vector.shape_cast %67 : vector<1x1x32x256xf32> to vector<1x32x256xf32>
    %69 = vector.broadcast %38 : vector<1x32x1xf32> to vector<1x32x256xf32>
    %70 = arith.mulf %68, %69 : vector<1x32x256xf32>
    %c0_48 = arith.constant 0 : index
    %71 = arith.index_cast %c3_i32_44 : i32 to index
    %c0_49 = arith.constant 0 : index
    %c0_50 = arith.constant 0 : index
    %72 = vector.load %arg4[%c0_48, %71, %c0_49, %c0_50] : memref<1x4x32x256xf32, #tpu.memory_space<vmem>>, vector<1x1x32x256xf32>
    %73 = vector.shape_cast %72 : vector<1x1x32x256xf32> to vector<1x32x256xf32>
    %74 = vector.shape_cast %70 : vector<1x32x256xf32> to vector<1x1x32x256xf32>
    tpu.vector_store %arg4[%c0_48, %71, %c0_49, %c0_50], %74 {strides = array<i32>} : memref<1x4x32x256xf32, #tpu.memory_space<vmem>>, vector<1x1x32x256xf32>,
    %c4_i32 = arith.constant 4 : i32
    return
  }
  func.func @transform_0(%arg0: i32) -> (i32, i32, i32, i32) {
    %c0_i32 = arith.constant 0 : i32
    %c0_i32_0 = arith.constant 0 : i32
    %c0_i32_1 = arith.constant 0 : i32
    %c0_i32_2 = arith.constant 0 : i32
    return %arg0, %c0_i32, %c0_i32_0, %c0_i32_1 : i32, i32, i32, i32
  }
  func.func @transform_1(%arg0: i32) -> (i32, i32) {
    %c0_i32 = arith.constant 0 : i32
    %c0_i32_0 = arith.constant 0 : i32
    %c0_i32_1 = arith.constant 0 : i32
    return %c0_i32, %c0_i32_0 : i32, i32
  }
  func.func @transform_2(%arg0: i32) -> (i32, i32) {
    %c0_i32 = arith.constant 0 : i32
    %c0_i32_0 = arith.constant 0 : i32
    %c0_i32_1 = arith.constant 0 : i32
    return %c0_i32, %c0_i32_0 : i32, i32
  }
  func.func @transform_3(%arg0: i32) -> (i32, i32, i32, i32) {
    %c0_i32 = arith.constant 0 : i32
    %c0_i32_0 = arith.constant 0 : i32
    %c0_i32_1 = arith.constant 0 : i32
    %c0_i32_2 = arith.constant 0 : i32
    return %arg0, %c0_i32, %c0_i32_0, %c0_i32_1 : i32, i32, i32, i32
  }
}

</mosaic_0001>

<llo_original>
// kernel: tpu_custom_call.1
$region0: #{tpu_custom_call.1}
  #allocation0 [shape = 'u32[]', space=smem, size = 0x4, offset = 0x4, fixed_abs, tag = 'smem constant byte address 0x4 - core index']
  #allocation1 [shape = 'u32[72,128]{1,0:T(1,128)}', space=vmem, size = 0x9000, scoped, tag = 'internal scratch']
  %s0 = inlined_call_operand.hbm [shape: f32[2,4,32,256], index: 0, kind: input, shape index: {}]
  %s1 = inlined_call_operand.vmem [shape: f32[32,4], index: 1, kind: input, shape index: {}]
  %s2 = inlined_call_operand.vmem [shape: f32[4,32], index: 2, kind: input, shape index: {}]
  %s3 = inlined_call_operand.hbm [shape: f32[2,4,32,256], index: 3, kind: output, shape index: {}]
  %s4 = sld [smem:[#allocation0]]
  $region49: #{tpu_custom_call.1} parent=0
    _
  %s6 = ssub.s32 1, %s4
  %s7 = scalar_select 0, %s6, %s4
  $region1: #{tpu_custom_call.1} parent=0
    #allocation2 [shape = 'u8[262144]{0}', space=vmem, size = 0x40000, scoped, tag = 'input window, operand 0']
    #allocation3 [shape = 's32[2]{0}', space=sflag, size = 0x8, scoped, tag = 'scoped memory for tpu_custom_call.1']
    #allocation4 [shape = 's32[2]{0}', space=sflag, size = 0x8, scoped, tag = 'scoped memory for tpu_custom_call.1']
    #allocation5 [shape = 'u8[262144]{0}', space=vmem, size = 0x40000, scoped, tag = 'output window, operand 0']
    %8 = vsyncpa [#allocation3], 0
    %s9 = scalar_lea.sflag [#allocation3], 1
    %10 = vsyncpa %s9, 0
    %11 = vsyncpa [#allocation4], 0
    %s12 = scalar_lea.sflag [#allocation4], 1
    %13 = vsyncpa %s12, 0
    loop: start=0, step=1, limit=4
    $region2: #{tpu_custom_call.1} parent=1 // loop_pre_header
      _
    $region3: #{tpu_custom_call.1} parent=1 // loop_header
      %s15 = sphi 0, %s19
      %p16 = scmp.ge.s32.totalorder %s15, 4
      %s25 = sphi 0, %s27
      %s28 = sphi 0, %s25
      %s29 = sphi 0, %s28
      %s45 = sphi 0, %s29
      %s49 = sphi 0, %s49
      %s51 = sphi 0, %s49
      %s52 = sphi 0, %s51
      %s66 = sphi 0, %s52
      %s70 = sphi 0, %s70
      %s72 = sphi 0, %s70
      %s73 = sphi 0, %s72
      %s87 = sphi 0, %s73
      %s93 = sphi 0, %s95
      %s96 = sphi 0, %s93
      %s97 = sphi 0, %s96
      %s113 = sphi 0, %s97
    $region4: #{tpu_custom_call.1} parent=1 // loop_header_branch
      %18 = sbr.rel (%p16) target = $region8
    $region5: #{tpu_custom_call.1} parent=1 // loop_body
      %s20 = ssub.s32 %s15, 1
      %s21 = ssub.s32 %s15, 2
      %s22 = sadd.s32 %s15, 1
      %s23 = ssub.s32 %s15, %s22
      %p24 = scmp.eq.s32.totalorder %s23, 0
      %s26 = sadd.s32 %s25, 1
      %s27 = scalar_select %p24, %s25, %s26
      %p30 = pneg %p24
      %p31 = scmp.eq.s32.totalorder %s15, 1
      %p32 = por %p30, %p31
      %p33 = scmp.ne.s32.totalorder %s25, %s28
      %p34 = scmp.eq.s32.totalorder %s15, 0
      %p35 = por %p33, %p34
      %p36 = scmp.ne.s32.totalorder %s25, %s28
      %p37 = scmp.eq.s32.totalorder %s20, 1
      %p38 = por %p36, %p37
      %p39 = scmp.ne.s32.totalorder %s28, %s29
      %p40 = scmp.eq.s32.totalorder %s20, 0
      %p41 = por %p39, %p40
      %p42 = scmp.ne.s32.totalorder %s28, %s29
      %p43 = scmp.eq.s32.totalorder %s21, 1
      %p44 = por %p42, %p43
      %p46 = scmp.ne.s32.totalorder %s29, %s45
      %p47 = scmp.eq.s32.totalorder %s21, 0
      %p48 = por %p46, %p47
      %s50 = sadd.s32 %s49, 1
      %p53 = scmp.eq.s32.totalorder %s15, 1
      %p54 = scmp.ne.s32.totalorder %s49, %s51
      %p55 = scmp.eq.s32.totalorder %s15, 0
      %p56 = por %p54, %p55
      %p57 = scmp.ne.s32.totalorder %s49, %s51
      %p58 = scmp.eq.s32.totalorder %s20, 1
      %p59 = por %p57, %p58
      %p60 = scmp.ne.s32.totalorder %s51, %s52
      %p61 = scmp.eq.s32.totalorder %s20, 0
      %p62 = por %p60, %p61
      %p63 = scmp.ne.s32.totalorder %s51, %s52
      %p64 = scmp.eq.s32.totalorder %s21, 1
      %p65 = por %p63, %p64
      %p67 = scmp.ne.s32.totalorder %s52, %s66
      %p68 = scmp.eq.s32.totalorder %s21, 0
      %p69 = por %p67, %p68
      %s71 = sadd.s32 %s70, 1
      %p74 = scmp.eq.s32.totalorder %s15, 1
      %p75 = scmp.ne.s32.totalorder %s70, %s72
      %p76 = scmp.eq.s32.totalorder %s15, 0
      %p77 = por %p75, %p76
      %p78 = scmp.ne.s32.totalorder %s70, %s72
      %p79 = scmp.eq.s32.totalorder %s20, 1
      %p80 = por %p78, %p79
      %p81 = scmp.ne.s32.totalorder %s72, %s73
      %p82 = scmp.eq.s32.totalorder %s20, 0
      %p83 = por %p81, %p82
      %p84 = scmp.ne.s32.totalorder %s72, %s73
      %p85 = scmp.eq.s32.totalorder %s21, 1
      %p86 = por %p84, %p85
      %p88 = scmp.ne.s32.totalorder %s73, %s87
      %p89 = scmp.eq.s32.totalorder %s21, 0
      %p90 = por %p88, %p89
      %s91 = ssub.s32 %s15, %s22
      %p92 = scmp.eq.s32.totalorder %s91, 0
      %s94 = sadd.s32 %s93, 1
      %s95 = scalar_select %p92, %s93, %s94
      %p98 = pneg %p92
      %p99 = scmp.eq.s32.totalorder %s15, 1
      %p100 = por %p98, %p99
      %p101 = scmp.ne.s32.totalorder %s93, %s96
      %p102 = scmp.eq.s32.totalorder %s15, 0
      %p103 = por %p101, %p102
      %p104 = scmp.ne.s32.totalorder %s93, %s96
      %p105 = scmp.eq.s32.totalorder %s20, 1
      %p106 = por %p104, %p105
      %p107 = scmp.ne.s32.totalorder %s96, %s97
      %p108 = scmp.eq.s32.totalorder %s20, 0
      %p109 = por %p107, %p108
      %p110 = scmp.ne.s32.totalorder %s96, %s97
      %p111 = scmp.eq.s32.totalorder %s21, 1
      %p112 = por %p110, %p111
      %p114 = scmp.ne.s32.totalorder %s97, %s113
      %p115 = scmp.eq.s32.totalorder %s21, 0
      %p116 = por %p114, %p115
      %p117 = scmp.le.s32.totalorder 1, %s15
      %p118 = scmp.lt.s32.totalorder %s15, 3
      %p119 = pnand %p117, %p118
      %p120 = pneg %p119
      // Predicated region
      $region9: #{tpu_custom_call.1} parent=5 // pred_check
        _
      $region10: #{tpu_custom_call.1} parent=5 // pred_check_branch
        %122 = sbr.rel (%p119) target = $region12
      $region11: #{tpu_custom_call.1} parent=5 // pred_region
        %s123 = ssub.s32 %s15, 1
        // Predicated region
        $region13: #{tpu_custom_call.1} parent=11 // pred_check
          %p124 = pneg %p62
        $region14: #{tpu_custom_call.1} parent=11 // pred_check_branch
          %126 = sbr.rel (%p124) target = $region16
        $region15: #{tpu_custom_call.1} parent=11 // pred_region
          _
        $region16: #{tpu_custom_call.1} parent=11 // pred_fallthru
          _
        // Predicated region
        $region17: #{tpu_custom_call.1} parent=11 // pred_check
          %p127 = pneg %p83
        $region18: #{tpu_custom_call.1} parent=11 // pred_check_branch
          %129 = sbr.rel (%p127) target = $region20
        $region19: #{tpu_custom_call.1} parent=11 // pred_region
          _
        $region20: #{tpu_custom_call.1} parent=11 // pred_fallthru
          _
      $region12: #{tpu_custom_call.1} parent=5 // pred_fallthru
        _
      %p130 = scmp.lt.s32.totalorder %s15, 2
      // Predicated region
      $region21: #{tpu_custom_call.1} parent=5 // pred_check
        %p131 = pneg %p130
      $region22: #{tpu_custom_call.1} parent=5 // pred_check_branch
        %133 = sbr.rel (%p131) target = $region24
      $region23: #{tpu_custom_call.1} parent=5 // pred_region
        // Predicated region
        $region25: #{tpu_custom_call.1} parent=23 // pred_check
          %p134 = pneg %p35
        $region26: #{tpu_custom_call.1} parent=23 // pred_check_branch
          %136 = sbr.rel (%p134) target = $region28
        $region27: #{tpu_custom_call.1} parent=23 // pred_region
          %s137 = sand.u32 %s25, 1
          %s138 = scalar_lea.sflag [#allocation3], %s137
          %s139 = sand.u32 %s25, 1
          %s140 = smul.addr %s139, 256
          %s141 = scalar_lea.vmem [#allocation2], %s140
          %143 = vsyncadd %s138, 0
          %s144 = smul.addr %s15, 32
          %s145 = smul.addr %s144, 8
          %s146 = scalar_lea.hbm %s0, %s145
          %s147 = sshll.u32 %s146, 4
          %s148 = int_to_ptr.hbm [resolvable:$true] %s147
          %s149 = sshll.u32 %s141, 4
          %s150 = int_to_ptr.vmem [resolvable:$true] %s149
          %155 = dma.hbm_to_vmem [thread:$0]  %s148, 4096, %s150, %s138, 256, 256, 16
        $region28: #{tpu_custom_call.1} parent=23 // pred_fallthru
          _
      $region24: #{tpu_custom_call.1} parent=5 // pred_fallthru
        _
      %p156 = scmp.le.s32.totalorder 1, %s15
      %p157 = scmp.lt.s32.totalorder %s15, 3
      %p158 = pnand %p156, %p157
      %p159 = pneg %p158
      // Predicated region
      $region29: #{tpu_custom_call.1} parent=5 // pred_check
        _
      $region30: #{tpu_custom_call.1} parent=5 // pred_check_branch
        %161 = sbr.rel (%p158) target = $region32
      $region31: #{tpu_custom_call.1} parent=5 // pred_region
        %s162 = ssub.s32 %s15, 1
        %s163 = sand.u32 %s28, 1
        %s164 = scalar_lea.sflag [#allocation3], %s163
        %s165 = sand.u32 %s28, 1
        %s166 = smul.addr %s165, 256
        %s167 = scalar_lea.vmem [#allocation2], %s166
        // Predicated region
        $region33: #{tpu_custom_call.1} parent=31 // pred_check
          %p168 = pneg %p41
        $region34: #{tpu_custom_call.1} parent=31 // pred_check_branch
          %170 = sbr.rel (%p168) target = $region36
        $region35: #{tpu_custom_call.1} parent=31 // pred_region
          %172 = dma.done %s164, 4096
        $region36: #{tpu_custom_call.1} parent=31 // pred_fallthru
          _
        %s173 = sand.u32 %s28, 1
        %s174 = scalar_lea.sflag [#allocation3], %s173
        %s175 = sand.u32 %s28, 1
        %s176 = smul.addr %s175, 256
        %s177 = scalar_lea.vmem [#allocation2], %s176
        %p178 = pneg %p41
        %p179 = pneg %p38
        %p180 = pneg %p62
        %p181 = pneg %p59
        %p182 = pneg %p83
        %p183 = pneg %p80
        %p184 = pneg %p109
        %p185 = pneg %p106
        %s186 = sand.u32 %s96, 1
        %s187 = scalar_lea.sflag [#allocation4], %s186
        %s188 = sand.u32 %s96, 1
        %s189 = smul.addr %s188, 256
        %s190 = scalar_lea.vmem [#allocation5], %s189
        %v191 = vld [vmem:[%s167] sm:$0xff]
        %v192 = vld [vmem:[%s167 + $0x8] sm:$0xff]
        %v193 = vld [vmem:[%s167 + $0x10] sm:$0xff]
        %v194 = vld [vmem:[%s167 + $0x18] sm:$0xff]
        %v195 = vld [vmem:[%s167 + $0x20] sm:$0xff]
        %v196 = vld [vmem:[%s167 + $0x28] sm:$0xff]
        %v197 = vld [vmem:[%s167 + $0x30] sm:$0xff]
        %v198 = vld [vmem:[%s167 + $0x38] sm:$0xff]
        %s199 = scalar_lea.vmem %s167, 64 [#allocation2]
        %v200 = vld [vmem:[%s199] sm:$0xff]
        %v201 = vld [vmem:[%s199 + $0x8] sm:$0xff]
        %v202 = vld [vmem:[%s199 + $0x10] sm:$0xff]
        %v203 = vld [vmem:[%s199 + $0x18] sm:$0xff]
        %v204 = vld [vmem:[%s199 + $0x20] sm:$0xff]
        %v205 = vld [vmem:[%s199 + $0x28] sm:$0xff]
        %v206 = vld [vmem:[%s199 + $0x30] sm:$0xff]
        %v207 = vld [vmem:[%s199 + $0x38] sm:$0xff]
        %v208 = vmax.f32 %v191, %v200
        %v209 = vmax.f32 %v192, %v201
        %v210 = vmax.f32 %v193, %v202
        %v211 = vmax.f32 %v194, %v203
        %v212 = vmax.f32 %v195, %v204
        %v213 = vmax.f32 %v196, %v205
        %v214 = vmax.f32 %v197, %v206
        %v215 = vmax.f32 %v198, %v207
        %v216 = vadd.f32 %v191, %v200
        %v217 = vadd.f32 %v192, %v201
        %v218 = vadd.f32 %v193, %v202
        %v219 = vadd.f32 %v194, %v203
        %v220 = vadd.f32 %v195, %v204
        %v221 = vadd.f32 %v196, %v205
        %v222 = vadd.f32 %v197, %v206
        %v223 = vadd.f32 %v198, %v207
        %s224 = scalar_lea.vmem %s167, 128 [#allocation2]
        %v225 = vld [vmem:[%s224] sm:$0xff]
        %v226 = vld [vmem:[%s224 + $0x8] sm:$0xff]
        %v227 = vld [vmem:[%s224 + $0x10] sm:$0xff]
        %v228 = vld [vmem:[%s224 + $0x18] sm:$0xff]
        %v229 = vld [vmem:[%s224 + $0x20] sm:$0xff]
        %v230 = vld [vmem:[%s224 + $0x28] sm:$0xff]
        %v231 = vld [vmem:[%s224 + $0x30] sm:$0xff]
        %v232 = vld [vmem:[%s224 + $0x38] sm:$0xff]
        %v233 = vmax.f32 %v208, %v225
        %v234 = vmax.f32 %v209, %v226
        %v235 = vmax.f32 %v210, %v227
        %v236 = vmax.f32 %v211, %v228
        %v237 = vmax.f32 %v212, %v229
        %v238 = vmax.f32 %v213, %v230
        %v239 = vmax.f32 %v214, %v231
        %v240 = vmax.f32 %v215, %v232
        %v241 = vadd.f32 %v216, %v225
        %v242 = vadd.f32 %v217, %v226
        %v243 = vadd.f32 %v218, %v227
        %v244 = vadd.f32 %v219, %v228
        %v245 = vadd.f32 %v220, %v229
        %v246 = vadd.f32 %v221, %v230
        %v247 = vadd.f32 %v222, %v231
        %v248 = vadd.f32 %v223, %v232
        %s249 = scalar_lea.vmem %s167, 192 [#allocation2]
        %v250 = vld [vmem:[%s249] sm:$0xff]
        %v251 = vld [vmem:[%s249 + $0x8] sm:$0xff]
        %v252 = vld [vmem:[%s249 + $0x10] sm:$0xff]
        %v253 = vld [vmem:[%s249 + $0x18] sm:$0xff]
        %v254 = vld [vmem:[%s249 + $0x20] sm:$0xff]
        %v255 = vld [vmem:[%s249 + $0x28] sm:$0xff]
        %v256 = vld [vmem:[%s249 + $0x30] sm:$0xff]
        %v257 = vld [vmem:[%s249 + $0x38] sm:$0xff]
        %v258 = vmax.f32 %v233, %v250
        %v259 = vmax.f32 %v234, %v251
        %v260 = vmax.f32 %v235, %v252
        %v261 = vmax.f32 %v236, %v253
        %v262 = vmax.f32 %v237, %v254
        %v263 = vmax.f32 %v238, %v255
        %v264 = vmax.f32 %v239, %v256
        %v265 = vmax.f32 %v240, %v257
        %v266 = vadd.f32 %v241, %v250
        %v267 = vadd.f32 %v242, %v251
        %v268 = vadd.f32 %v243, %v252
        %v269 = vadd.f32 %v244, %v253
        %v270 = vadd.f32 %v245, %v254
        %v271 = vadd.f32 %v246, %v255
        %v272 = vadd.f32 %v247, %v256
        %v273 = vadd.f32 %v248, %v257
        %v274 = vmax.f32 %v258, %v259
        %275 = vmax.xlane.f32.xlu0 %v274
        %v276 = vpop.xlane.xlu0 %275
        %v277 = vmax.f32 %v260, %v261
        %278 = vmax.xlane.f32.xlu0 %v277
        %v279 = vpop.xlane.xlu0 %278
        %v280 = vmax.f32 %v262, %v263
        %281 = vmax.xlane.f32.xlu0 %v280
        %v282 = vpop.xlane.xlu0 %281
        %v283 = vmax.f32 %v264, %v265
        %284 = vmax.xlane.f32.xlu0 %v283
        %v285 = vpop.xlane.xlu0 %284
        %v286 = vadd.f32 %v266, %v267
        %287 = vadd.xlane.f32.xlu0 %v286
        %v288 = vpop.xlane.xlu0 %287
        %v289 = vadd.f32 %v268, %v269
        %290 = vadd.xlane.f32.xlu0 %v289
        %v291 = vpop.xlane.xlu0 %290
        %v292 = vadd.f32 %v270, %v271
        %293 = vadd.xlane.f32.xlu0 %v292
        %v294 = vpop.xlane.xlu0 %293
        %v295 = vadd.f32 %v272, %v273
        %296 = vadd.xlane.f32.xlu0 %v295
        %v297 = vpop.xlane.xlu0 %296
        %v298 = vmul.f32 %v288, 0.0009765625
        %v299 = vmul.f32 %v291, 0.0009765625
        %v300 = vmul.f32 %v294, 0.0009765625
        %v301 = vmul.f32 %v297, 0.0009765625
        %v306 = vlaneseq
        %v307 = vand.u32 %v306, 127
        %v308 = vperm.slane %v276, %v307
        %v309 = vadd.s32 %v307, 4294967288
        %v310 = vperm.slane %v279, %v309
        %vm311 = vcmask 130112
        %v312 = vsel %vm311, %v310, %v308
        %v313 = vadd.s32 %v307, 4294967280
        %v314 = vperm.slane %v282, %v313
        %vm315 = vcmask 195712
        %v316 = vsel %vm315, %v314, %v312
        %v317 = vadd.s32 %v307, 4294967272
        %v318 = vperm.slane %v285, %v317
        %vm319 = vcmask 261312
        %v320 = vsel %vm319, %v318, %v316
        %v326 = vperm.slane %v298, %v307
        %v327 = vperm.slane %v299, %v309
        %v328 = vsel %vm311, %v327, %v326
        %v329 = vperm.slane %v300, %v313
        %v330 = vsel %vm315, %v329, %v328
        %v331 = vperm.slane %v301, %v317
        %v332 = vsel %vm319, %v331, %v330
        %vm334 = vcmask 1040384
        %v335 = vsel %vm334, %v320, %v332
        %v336 = vld [vmem:[%s1] sm:$0xff]
        %v337 = vld [vmem:[%s1 + $0x8] sm:$0xff]
        %v338 = vld [vmem:[%s1 + $0x10] sm:$0xff]
        %v339 = vld [vmem:[%s1 + $0x18] sm:$0xff]
        %vm340 = vcmask 261120
        %v342 = vsel %vm340, %v335, 0
        %344 = vmatpush.msra.mxu0 0.0
        %345 = vmatpush.msra.mxu0 0.0
        %346 = vmatpush.msra.mxu0 0.0
        %347 = vmatpush.msra.mxu0 0.0
        %348 = vmatpush.msra.mxu0 0.0
        %349 = vmatpush.msra.mxu0 0.0
        %350 = vmatpush.msra.mxu0 0.0
        %351 = vmatpush.msra.mxu0 0.0
        %352 = vmatpush.msra.mxu0 0.0
        %353 = vmatpush.msra.mxu0 0.0
        %354 = vmatpush.msra.mxu0 0.0
        %355 = vmatpush.msra.mxu0 0.0
        %356 = vmatpush.msra.mxu0 %v339
        %357 = vmatpush.msra.mxu0 %v338
        %358 = vmatpush.msra.mxu0 %v337
        %359 = vmatpush.msra.mxu0 %v336
        %360 = vmatmul.f32.gmra.mxu0 %v342
        %v361 = vpop.f32.mrf.mxu0
        %v362 = vadd.f32 0.0, %v361
        %363 = vdwg.mxu0
        %v364 = vmax.f32 %v362, 0.0
        %v365 = vld [vmem:[%s2] sm:$0xf]
        %vm366 = vcmask 31744
        %v368 = vsel %vm366, %v364, 0
        %vm370 = vcmask 1043456
        %v372 = vsel %vm370, %v365, 0
        %374 = vmatpush.msra.mxu0 0.0
        %375 = vmatpush.msra.mxu0 0.0
        %376 = vmatpush.msra.mxu0 0.0
        %377 = vmatpush.msra.mxu0 0.0
        %378 = vmatpush.msra.mxu0 0.0
        %379 = vmatpush.msra.mxu0 0.0
        %380 = vmatpush.msra.mxu0 0.0
        %381 = vmatpush.msra.mxu0 0.0
        %382 = vmatpush.msra.mxu0 0.0
        %383 = vmatpush.msra.mxu0 0.0
        %384 = vmatpush.msra.mxu0 0.0
        %385 = vmatpush.msra.mxu0 0.0
        %386 = vmatpush.msra.mxu0 0.0
        %387 = vmatpush.msra.mxu0 0.0
        %388 = vmatpush.msra.mxu0 0.0
        %389 = vmatpush.msra.mxu0 %v372
        %390 = vmatmul.f32.gmra.mxu0 %v368
        %v391 = vpop.f32.mrf.mxu0
        %v392 = vadd.f32 0.0, %v391
        %393 = vdwg.mxu0
        %v395 = vrot.slane %v392, 1
        %v397 = vadd.f32 %v392, %v395
        %v398 = vxor.u32 %v397, 2147483648
        %v399 = vmul.f32 %v398, 1.442695
        %v400 = vpow.pop %v399
        %v401 = vadd.f32 %v400, 1.0
        %v402 = vrcp.pop %v401
        %v403 = vmul.f32 %v401, %v402
        %v404 = vsub.f32 1.0, %v403
        %v405 = vmul.f32 %v402, %v404
        %v406 = vadd.f32 %v402, %v405
        %vm407 = vweird.f32 %v401
        %vm408 = vweird.f32 %v402
        %vm409 = vmor %vm407, %vm408
        %v410 = vsel %vm409, %v402, %v406
        %v411 = vand.u32 2147483647, %v401
        %vm412 = vcmp.eq.f32.partialorder %v411, 8.507059e+37
        %v413 = vand.u32 %v401, 2147483648
        %v414 = vor.u32 1.1754944e-38, %v413
        %v415 = vsel %vm412, %v414, %v410
        %v416 = vmul.f32 1.0, %v415
        %v417 = vadd.f32 %v416, 1.0
        %v418 = vperm.slane %v417, 0
        %v419 = vlaneseq
        %v420 = vshrl.u32 %v419, 7
        %422 = vset.pattern.permute.xlu0 %v420
        %423 = vperm.xlu0 %422, %v418
        %v424 = vpop.permute.xlu0 %423
        %v425 = vlaneseq
        %v426 = vshrl.u32 %v425, 7
        %v427 = vadd.s32 %v426, 8
        %428 = vset.pattern.permute.xlu0 %v427
        %429 = vperm.xlu0 %428, %v418
        %v430 = vpop.permute.xlu0 %429
        %v431 = vlaneseq
        %v432 = vshrl.u32 %v431, 7
        %v433 = vadd.s32 %v432, 16
        %434 = vset.pattern.permute.xlu0 %v433
        %435 = vperm.xlu0 %434, %v418
        %v436 = vpop.permute.xlu0 %435
        %v437 = vlaneseq
        %v438 = vshrl.u32 %v437, 7
        %v439 = vadd.s32 %v438, 24
        %440 = vset.pattern.permute.xlu0 %v439
        %441 = vperm.xlu0 %440, %v418
        %v442 = vpop.permute.xlu0 %441
        %v443 = vmul.f32 %v191, %v424
        %v444 = vmul.f32 %v192, %v424
        %v445 = vmul.f32 %v193, %v430
        %v446 = vmul.f32 %v194, %v430
        %v447 = vmul.f32 %v195, %v436
        %v448 = vmul.f32 %v196, %v436
        %v449 = vmul.f32 %v197, %v442
        %v450 = vmul.f32 %v198, %v442
        %451 = vst [vmem:[%s190] sm:$0xff] %v443
        %452 = vst [vmem:[%s190 + $0x8] sm:$0xff] %v444
        %453 = vst [vmem:[%s190 + $0x10] sm:$0xff] %v445
        %454 = vst [vmem:[%s190 + $0x18] sm:$0xff] %v446
        %455 = vst [vmem:[%s190 + $0x20] sm:$0xff] %v447
        %456 = vst [vmem:[%s190 + $0x28] sm:$0xff] %v448
        %457 = vst [vmem:[%s190 + $0x30] sm:$0xff] %v449
        %458 = vst [vmem:[%s190 + $0x38] sm:$0xff] %v450
        %v459 = vld [vmem:[%s199] sm:$0xff]
        %v460 = vld [vmem:[%s199 + $0x8] sm:$0xff]
        %v461 = vld [vmem:[%s199 + $0x10] sm:$0xff]
        %v462 = vld [vmem:[%s199 + $0x18] sm:$0xff]
        %v463 = vld [vmem:[%s199 + $0x20] sm:$0xff]
        %v464 = vld [vmem:[%s199 + $0x28] sm:$0xff]
        %v465 = vld [vmem:[%s199 + $0x30] sm:$0xff]
        %v466 = vld [vmem:[%s199 + $0x38] sm:$0xff]
        %v467 = vmul.f32 %v459, %v424
        %v468 = vmul.f32 %v460, %v424
        %v469 = vmul.f32 %v461, %v430
        %v470 = vmul.f32 %v462, %v430
        %v471 = vmul.f32 %v463, %v436
        %v472 = vmul.f32 %v464, %v436
        %v473 = vmul.f32 %v465, %v442
        %v474 = vmul.f32 %v466, %v442
        %s475 = scalar_lea.vmem %s190, 64 [#allocation5]
        %476 = vst [vmem:[%s475] sm:$0xff] %v467
        %477 = vst [vmem:[%s475 + $0x8] sm:$0xff] %v468
        %478 = vst [vmem:[%s475 + $0x10] sm:$0xff] %v469
        %479 = vst [vmem:[%s475 + $0x18] sm:$0xff] %v470
        %480 = vst [vmem:[%s475 + $0x20] sm:$0xff] %v471
        %481 = vst [vmem:[%s475 + $0x28] sm:$0xff] %v472
        %482 = vst [vmem:[%s475 + $0x30] sm:$0xff] %v473
        %483 = vst [vmem:[%s475 + $0x38] sm:$0xff] %v474
        %v484 = vld [vmem:[%s224] sm:$0xff]
        %v485 = vld [vmem:[%s224 + $0x8] sm:$0xff]
        %v486 = vld [vmem:[%s224 + $0x10] sm:$0xff]
        %v487 = vld [vmem:[%s224 + $0x18] sm:$0xff]
        %v488 = vld [vmem:[%s224 + $0x20] sm:$0xff]
        %v489 = vld [vmem:[%s224 + $0x28] sm:$0xff]
        %v490 = vld [vmem:[%s224 + $0x30] sm:$0xff]
        %v491 = vld [vmem:[%s224 + $0x38] sm:$0xff]
        %v492 = vmul.f32 %v484, %v424
        %v493 = vmul.f32 %v485, %v424
        %v494 = vmul.f32 %v486, %v430
        %v495 = vmul.f32 %v487, %v430
        %v496 = vmul.f32 %v488, %v436
        %v497 = vmul.f32 %v489, %v436
        %v498 = vmul.f32 %v490, %v442
        %v499 = vmul.f32 %v491, %v442
        %s500 = scalar_lea.vmem %s190, 128 [#allocation5]
        %501 = vst [vmem:[%s500] sm:$0xff] %v492
        %502 = vst [vmem:[%s500 + $0x8] sm:$0xff] %v493
        %503 = vst [vmem:[%s500 + $0x10] sm:$0xff] %v494
        %504 = vst [vmem:[%s500 + $0x18] sm:$0xff] %v495
        %505 = vst [vmem:[%s500 + $0x20] sm:$0xff] %v496
        %506 = vst [vmem:[%s500 + $0x28] sm:$0xff] %v497
        %507 = vst [vmem:[%s500 + $0x30] sm:$0xff] %v498
        %508 = vst [vmem:[%s500 + $0x38] sm:$0xff] %v499
        %v509 = vld [vmem:[%s249] sm:$0xff]
        %v510 = vld [vmem:[%s249 + $0x8] sm:$0xff]
        %v511 = vld [vmem:[%s249 + $0x10] sm:$0xff]
        %v512 = vld [vmem:[%s249 + $0x18] sm:$0xff]
        %v513 = vld [vmem:[%s249 + $0x20] sm:$0xff]
        %v514 = vld [vmem:[%s249 + $0x28] sm:$0xff]
        %v515 = vld [vmem:[%s249 + $0x30] sm:$0xff]
        %v516 = vld [vmem:[%s249 + $0x38] sm:$0xff]
        %v517 = vmul.f32 %v509, %v424
        %v518 = vmul.f32 %v510, %v424
        %v519 = vmul.f32 %v511, %v430
        %v520 = vmul.f32 %v512, %v430
        %v521 = vmul.f32 %v513, %v436
        %v522 = vmul.f32 %v514, %v436
        %v523 = vmul.f32 %v515, %v442
        %v524 = vmul.f32 %v516, %v442
        %s525 = scalar_lea.vmem %s190, 192 [#allocation5]
        %526 = vst [vmem:[%s525] sm:$0xff] %v517
        %527 = vst [vmem:[%s525 + $0x8] sm:$0xff] %v518
        %528 = vst [vmem:[%s525 + $0x10] sm:$0xff] %v519
        %529 = vst [vmem:[%s525 + $0x18] sm:$0xff] %v520
        %530 = vst [vmem:[%s525 + $0x20] sm:$0xff] %v521
        %531 = vst [vmem:[%s525 + $0x28] sm:$0xff] %v522
        %532 = vst [vmem:[%s525 + $0x30] sm:$0xff] %v523
        %533 = vst [vmem:[%s525 + $0x38] sm:$0xff] %v524
        %s534 = sand.u32 %s96, 1
        %s535 = scalar_lea.sflag [#allocation4], %s534
        %s536 = sand.u32 %s96, 1
        %s537 = smul.addr %s536, 256
        %s538 = scalar_lea.vmem [#allocation5], %s537
        // Predicated region
        $region37: #{tpu_custom_call.1} parent=31 // pred_check
          %p539 = pneg %p106
        $region38: #{tpu_custom_call.1} parent=31 // pred_check_branch
          %541 = sbr.rel (%p539) target = $region40
        $region39: #{tpu_custom_call.1} parent=31 // pred_region
          %543 = vsyncadd %s535, 0
          %s544 = smul.addr %s20, 32
          %s545 = smul.addr %s544, 8
          %s546 = scalar_lea.hbm %s3, %s545
          %s547 = sshll.u32 %s538, 4
          %s548 = int_to_ptr.vmem [resolvable:$true] %s547
          %s549 = sshll.u32 %s546, 4
          %s550 = int_to_ptr.hbm [resolvable:$true] %s549
          %555 = dma.vmem_to_hbm [thread:$0]  %s548, 4096, %s550, %s535, 256, 256, 16
        $region40: #{tpu_custom_call.1} parent=31 // pred_fallthru
          _
      $region32: #{tpu_custom_call.1} parent=5 // pred_fallthru
        _
      %p556 = scmp.le.s32.totalorder 2, %s15
      // Predicated region
      $region41: #{tpu_custom_call.1} parent=5 // pred_check
        %p557 = pneg %p556
      $region42: #{tpu_custom_call.1} parent=5 // pred_check_branch
        %559 = sbr.rel (%p557) target = $region44
      $region43: #{tpu_custom_call.1} parent=5 // pred_region
        %s560 = ssub.s32 %s15, 2
        // Predicated region
        $region45: #{tpu_custom_call.1} parent=43 // pred_check
          %p561 = pneg %p112
        $region46: #{tpu_custom_call.1} parent=43 // pred_check_branch
          %563 = sbr.rel (%p561) target = $region48
        $region47: #{tpu_custom_call.1} parent=43 // pred_region
          %s564 = sand.u32 %s97, 1
          %s565 = scalar_lea.sflag [#allocation4], %s564
          %s566 = sand.u32 %s97, 1
          %s567 = smul.addr %s566, 256
          %s568 = scalar_lea.vmem [#allocation5], %s567
          %570 = dma.done %s565, 4096
        $region48: #{tpu_custom_call.1} parent=43 // pred_fallthru
          _
      $region44: #{tpu_custom_call.1} parent=5 // pred_fallthru
        _
    $region6: #{tpu_custom_call.1} parent=1 // loop_footer
      %s19 = sadd.s32 1, %s15
    $region7: #{tpu_custom_call.1} parent=1 // loop_footer_branch
      %14 = sbr.rel target = $region3
    $region8: #{tpu_custom_call.1} parent=1 // loop_exit
      _
    %571 = vsyncpa [#allocation3], 1
    %s572 = scalar_lea.sflag [#allocation3], 1
    %573 = vsyncpa %s572, 1
    %574 = vsyncpa [#allocation4], 1
    %s575 = scalar_lea.sflag [#allocation4], 1
    %576 = vsyncpa %s575, 1

</llo_original>
